<compile_context>
chip_gen: v6e
topology: v6e:2x2x1
jax: 0.10.0
libtpu: 0.0.40
codegen_flags: <defaults>
</compile_context>

<pallas_src>
import jax
import jax.numpy as jnp
from jax.experimental import pallas as pl
from jax.experimental.pallas import tpu as pltpu

_TB_MAX = 8192  # max batch-lane tile per grid step


def _softmax_sample_kernel(t_ref, x_ref, u_ref, tri_ref, a_ref):
    """Temperature softmax + inverse-CDF multinomial sample, batch on lanes.

    x_ref:   (N, TB)  logits block (actions on sublanes, batch on lanes).
    u_ref:   (1, TB)  one uniform per batch column.
    tri_ref: (N, N)   lower-triangular ones (resident): tri @ e = inclusive cumsum.
    a_ref:   (1, TB)  int32 sampled action per batch column (lane-dense store).
    """
    n = x_ref.shape[0]
    t = t_ref[0]                                        # temperature (SMEM scalar)

    # Scale + numerically-stable softmax numerator over the action (sublane) axis.
    x = x_ref[...].astype(jnp.float32) * t              # (N, TB)
    m = jnp.max(x, axis=0, keepdims=True)               # (1, TB)
    e = jnp.exp(x - m)                                  # (N, TB)

    # Un-normalised inclusive CDF down the action axis:
    #   cdf[i, b] = sum_{j <= i} e[j, b]
    cdf = jnp.dot(tri_ref[...], e, preferred_element_type=jnp.float32)

    # Last CDF row is the full softmax denominator -> no extra reduction needed.
    s = cdf[n - 1:n, :]                                 # (1, TB)

    # Inverse-CDF sampling without a divide:  cdf/s <= u  <=>  cdf <= u*s.
    thr = u_ref[...] * s                                # (1, TB)
    counts = jnp.sum((cdf <= thr).astype(jnp.int32), axis=0, keepdims=True)
    a_ref[...] = jnp.minimum(counts, n - 1)             # fp-safety clamp


def _round_up(x, m):
    return ((x + m - 1) // m) * m


def _pick_tile(b):
    """Batch-lane tile: exact for tiny batches, >=2 grid steps for big ones."""
    if b <= 128:
        return b                      # single block equal to the full lane extent
    half = -(-b // 2)                 # ensure >= 2 grid steps (v7x megacore split)
    return max(128, min(_TB_MAX, _round_up(half, 128)))


def softmax_body(outputs, temperature, key):
    """outputs: (batch, num_actions) float. Returns (batch, 1) int32 actions."""
    b, n = outputs.shape

    # Batch-on-lanes layout: one cheap (b, n) -> (n, b) transpose makes every
    # vector op lane-dense and the output a lane-dense (1, b) int32 row.
    x_t = outputs.astype(jnp.float32).T                      # (n, b)

    # One uniform per row (same randomness consumption as torch multinomial(1)).
    u = jax.random.uniform(key, (1, b), dtype=jnp.float32)   # (1, b)

    # tri[i, j] = 1.0 if j <= i (lower-triangular incl. diagonal), host-side.
    tri = jnp.tril(jnp.ones((n, n), dtype=jnp.float32))
    t_arr = jnp.asarray([temperature], dtype=jnp.float32)

    tb = _pick_tile(b)
    grid = -(-b // tb)     # ragged last block; OOB columns are discarded on store

    out = pl.pallas_call(
        _softmax_sample_kernel,
        grid=(grid,),
        in_specs=[
            pl.BlockSpec(memory_space=pltpu.MemorySpace.SMEM),  # temperature
            pl.BlockSpec((n, tb), lambda i: (0, i)),            # logits tile
            pl.BlockSpec((1, tb), lambda i: (0, i)),            # uniforms tile
            pl.BlockSpec((n, n), lambda i: (0, 0)),             # tri (resident)
        ],
        out_specs=pl.BlockSpec((1, tb), lambda i: (0, i)),
        out_shape=jax.ShapeDtypeStruct((1, b), jnp.int32),
        compiler_params=pltpu.CompilerParams(
            dimension_semantics=("parallel",)),
    )(t_arr, x_t, u, tri)

    # Back to the PyTorch-shaped (batch, 1) result.
    return out.reshape(b, 1)


def _reference(outputs, temperature, key):
    """Plain-JAX inverse-CDF reference using the same uniform draw as the kernel."""
    b, n = outputs.shape
    u = jax.random.uniform(key, (1, b), dtype=jnp.float32).T      # (b, 1)
    x = outputs.astype(jnp.float32) * temperature
    e = jnp.exp(x - jnp.max(x, axis=-1, keepdims=True))
    s = jnp.sum(e, axis=-1, keepdims=True)
    cdf = jnp.cumsum(e, axis=-1)
    return jnp.minimum(
        jnp.sum((cdf <= u * s).astype(jnp.int32), axis=-1, keepdims=True),
        n - 1,
    )


if __name__ == "__main__":
    key = jax.random.PRNGKey(0)
    k_logits, k_sample, k_logits2, k_sample2 = jax.random.split(key, 4)

    T = 7.0               # temperature (SoftmaxBody(T=7) as used in the Doom AI)
    N = 16                # number of candidate actions

    # Small batch: single exact block.
    B = 8
    outputs = jax.random.normal(k_logits, (B, N), dtype=jnp.float32)
    actions = jax.block_until_ready(softmax_body(outputs, T, k_sample))
    assert actions.shape == (B, 1), actions.shape
    assert actions.dtype == jnp.int32
    assert bool(jnp.all((actions >= 0) & (actions < N)))
    assert bool(jnp.all(actions == _reference(outputs, T, k_sample)))

    # Larger, non-multiple batch: exercises the ragged last block and a 2-step
    # grid (the v7x megacore-parallel path).
    B2 = 200
    outputs2 = jax.random.normal(k_logits2, (B2, N), dtype=jnp.float32)
    actions2 = jax.block_until_ready(softmax_body(outputs2, T, k_sample2))
    assert actions2.shape == (B2, 1), actions2.shape
    assert bool(jnp.all((actions2 >= 0) & (actions2 < N)))
    assert bool(jnp.all(actions2 == _reference(outputs2, T, k_sample2)))

    print("KERNEL_OK")
</pallas_src>

<mosaic_0001>
module attributes {stable_mosaic.version = 11 : i64} {
  func.func @_softmax_sample_kernel(%arg0: i32, %arg1: memref<1xf32, #tpu.memory_space<smem>>, %arg2: memref<16x8xf32, #tpu.memory_space<vmem>>, %arg3: memref<1x8xf32, #tpu.memory_space<vmem>>, %arg4: memref<16x16xf32, #tpu.memory_space<vmem>>, %arg5: memref<1x8xi32, #tpu.memory_space<vmem>>) attributes {dimension_semantics = [#tpu.dimension_semantics<parallel>], iteration_bounds = array<i64: 1>, scalar_prefetch = 0 : i64, scratch_operands = 0 : i64, tpu.core_type = #tpu.core_type<tc>, window_params = [{transform_indices = @transform_0, window_bounds = array<i64: 1>}, {transform_indices = @transform_1, window_bounds = array<i64: 16, 8>}, {transform_indices = @transform_2, window_bounds = array<i64: 1, 8>}, {pipeline_mode = #tpu.pipeline_mode<synchronous>, transform_indices = @transform_3, window_bounds = array<i64: 16, 16>}, {transform_indices = @transform_4, window_bounds = array<i64: 1, 8>}]} {
    %c0 = arith.constant 0 : index
    %0 = memref.load %arg1[%c0] : memref<1xf32, #tpu.memory_space<smem>>
    %c0_0 = arith.constant 0 : index
    %c0_1 = arith.constant 0 : index
    %1 = vector.load %arg2[%c0_0, %c0_1] : memref<16x8xf32, #tpu.memory_space<vmem>>, vector<16x8xf32>
    %2 = vector.broadcast %0 : f32 to vector<16x8xf32>
    %3 = arith.mulf %1, %2 : vector<16x8xf32>
    %cst = arith.constant dense<0xFF800000> : vector<8xf32>
    %4 = vector.multi_reduction <maximumf>, %3, %cst [0] : vector<16x8xf32> to vector<8xf32>
    %5 = vector.shape_cast %4 : vector<8xf32> to vector<1x8xf32>
    %6 = vector.broadcast %5 : vector<1x8xf32> to vector<16x8xf32>
    %7 = arith.subf %3, %6 : vector<16x8xf32>
    %8 = math.exp %7 : vector<16x8xf32>
    %c0_2 = arith.constant 0 : index
    %c0_3 = arith.constant 0 : index
    %9 = vector.load %arg4[%c0_2, %c0_3] : memref<16x16xf32, #tpu.memory_space<vmem>>, vector<16x16xf32>
    %cst_4 = arith.constant dense<0.000000e+00> : vector<16x8xf32>
    %10 = tpu.matmul %9, %8, %cst_4 {dimension_numbers = #tpu.dot_dimension_numbers<[1], [0], [0], [1], [0, 0, 1, 1], [], []>} : vector<16x16xf32>, vector<16x8xf32>, vector<16x8xf32> -> vector<16x8xf32>
    %11 = vector.extract_strided_slice %10 {offsets = [15, 0], sizes = [1, 8], strides = [1, 1]} : vector<16x8xf32> to vector<1x8xf32>
    %c0_5 = arith.constant 0 : index
    %c0_6 = arith.constant 0 : index
    %12 = vector.load %arg3[%c0_5, %c0_6] : memref<1x8xf32, #tpu.memory_space<vmem>>, vector<1x8xf32>
    %13 = arith.mulf %12, %11 : vector<1x8xf32>
    %14 = vector.broadcast %13 : vector<1x8xf32> to vector<16x8xf32>
    %15 = arith.cmpf ole, %10, %14 : vector<16x8xf32>
    %16 = arith.extui %15 : vector<16x8xi1> to vector<16x8xi32>
    %cst_7 = arith.constant dense<0> : vector<8xi32>
    %17 = vector.multi_reduction <add>, %16, %cst_7 [0] : vector<16x8xi32> to vector<8xi32>
    %18 = vector.shape_cast %17 : vector<8xi32> to vector<1x8xi32>
    %c15_i32 = arith.constant 15 : i32
    %19 = vector.broadcast %c15_i32 : i32 to vector<1x8xi32>
    %20 = arith.minsi %18, %19 : vector<1x8xi32>
    %c0_8 = arith.constant 0 : index
    %c0_9 = arith.constant 0 : index
    %21 = vector.load %arg5[%c0_8, %c0_9] : memref<1x8xi32, #tpu.memory_space<vmem>>, vector<1x8xi32>
    tpu.vector_store %arg5[%c0_8, %c0_9], %20 {strides = array<i32>} : memref<1x8xi32, #tpu.memory_space<vmem>>, vector<1x8xi32>,
    return
  }
  func.func @transform_0(%arg0: i32) -> i32 {
    %c0_i32 = arith.constant 0 : i32
    %c0_i32_0 = arith.constant 0 : i32
    return %c0_i32 : i32
  }
  func.func @transform_1(%arg0: i32) -> (i32, i32) {
    %c0_i32 = arith.constant 0 : i32
    %c0_i32_0 = arith.constant 0 : i32
    return %c0_i32, %arg0 : i32, i32
  }
  func.func @transform_2(%arg0: i32) -> (i32, i32) {
    %c0_i32 = arith.constant 0 : i32
    %c0_i32_0 = arith.constant 0 : i32
    return %c0_i32, %arg0 : i32, i32
  }
  func.func @transform_3(%arg0: i32) -> (i32, i32) {
    %c0_i32 = arith.constant 0 : i32
    %c0_i32_0 = arith.constant 0 : i32
    %c0_i32_1 = arith.constant 0 : i32
    return %c0_i32, %c0_i32_0 : i32, i32
  }
  func.func @transform_4(%arg0: i32) -> (i32, i32) {
    %c0_i32 = arith.constant 0 : i32
    %c0_i32_0 = arith.constant 0 : i32
    return %c0_i32, %arg0 : i32, i32
  }
}

</mosaic_0001>

<llo_original>
// kernel: tpu_custom_call.1
$region0: #{tpu_custom_call.1}
  #allocation0 [shape = 'u32[]', space=smem, size = 0x4, offset = 0x4, fixed_abs, tag = 'smem constant byte address 0x4 - core index']
  #allocation1 [shape = 'u32[144,128]{1,0:T(1,128)}', space=vmem, size = 0x12000, scoped, tag = 'internal scratch']
  #allocation2 [shape = 'f32[1]{0:T(128)S(6)}', space=smem, size = 0x200, scoped, tag = 'scoped memory for tpu_custom_call.1']
  %s0 = inlined_call_operand.<no memory space> [shape: f32[1], index: 0, kind: input, shape index: {}]
  %s1 = inlined_call_operand.vmem [shape: f32[16,8], index: 1, kind: input, shape index: {}]
  %s2 = inlined_call_operand.vmem [shape: f32[1,8], index: 2, kind: input, shape index: {}]
  %s3 = inlined_call_operand.vmem [shape: f32[16,16], index: 3, kind: input, shape index: {}]
  %s4 = inlined_call_operand.hbm [shape: s32[1,8], index: 4, kind: output, shape index: {}]
  %s5 = sld [smem:[#allocation0]]
  $region26: #{tpu_custom_call.1} parent=0
    _
  %s7 = ssub.s32 1, %s5
  %s8 = scalar_select 0, %s7, %s5
  %9 = sst [smem:[#allocation2]] %s0
  $region1: #{tpu_custom_call.1} parent=0
    #allocation3 [shape = 'u8[512]{0}', space=vmem, size = 0x400, scoped, tag = 'output window, operand 0, single buffered']
    #allocation4 [shape = 's32[1]{0}', space=sflag, size = 0x4, scoped, tag = 'scoped memory for tpu_custom_call.1']
    %10 = vsyncpa [#allocation4], 0
    // Predicated region
    $region2: #{tpu_custom_call.1} parent=1 // pred_check
      _
    $region3: #{tpu_custom_call.1} parent=1 // pred_check_branch
      %12 = sbr.rel (0) target = $region5
    $region4: #{tpu_custom_call.1} parent=1 // pred_region
      _
    $region5: #{tpu_custom_call.1} parent=1 // pred_fallthru
      _
    // Predicated region
    $region6: #{tpu_custom_call.1} parent=1 // pred_check
      _
    $region7: #{tpu_custom_call.1} parent=1 // pred_check_branch
      %14 = sbr.rel (0) target = $region9
    $region8: #{tpu_custom_call.1} parent=1 // pred_region
      _
    $region9: #{tpu_custom_call.1} parent=1 // pred_fallthru
      _
    // Predicated region
    $region10: #{tpu_custom_call.1} parent=1 // pred_check
      _
    $region11: #{tpu_custom_call.1} parent=1 // pred_check_branch
      %16 = sbr.rel (0) target = $region13
    $region12: #{tpu_custom_call.1} parent=1 // pred_region
      _
    $region13: #{tpu_custom_call.1} parent=1 // pred_fallthru
      _
    // Predicated region
    $region14: #{tpu_custom_call.1} parent=1 // pred_check
      _
    $region15: #{tpu_custom_call.1} parent=1 // pred_check_branch
      %18 = sbr.rel (0) target = $region17
    $region16: #{tpu_custom_call.1} parent=1 // pred_region
      _
    $region17: #{tpu_custom_call.1} parent=1 // pred_fallthru
      _
    %s19 = sld [smem:[#allocation2]]
    %v20 = vld [vmem:[%s1] sm:$0xff]
    %v21 = vld [vmem:[%s1 + $0x8] sm:$0xff]
    %v22 = vstv %s19
    %v23 = vmul.f32 %v20, %v22
    %v24 = vmul.f32 %v21, %v22
    %vm25 = vcmask 64512
    %v26 = vsel %vm25, %v23, -inf
    %v27 = vsel %vm25, %v24, -inf
    %v28 = vmax.f32 %v26, %v27
    %v29 = vrot.slane %v28, 4
    %v30 = vmax.f32 %v28, %v29
    %v31 = vrot.slane %v30, 2
    %v32 = vmax.f32 %v30, %v31
    %v33 = vrot.slane %v32, 1
    %v34 = vmax.f32 %v32, %v33
    %v35 = vsub.f32 %v23, %v34
    %v36 = vsub.f32 %v24, %v34
    %v37 = vmul.f32 %v35, 1.442695
    %v38 = vpow.pop %v37
    %v39 = vmul.f32 %v36, 1.442695
    %v40 = vpow.pop %v39
    %v41 = vld [vmem:[%s3] sm:$0xff]
    %v42 = vld [vmem:[%s3 + $0x8] sm:$0xff]
    %vm43 = vcmask 130048
    %v45 = vsel %vm43, %v41, 0
    %v48 = vsel %vm43, %v42, 0
    %50 = vmatprep.subr.mxu0 0.0
    %51 = vmatpush1.msra.mxu0 0.0
    %52 = vmatprep.subr.mxu0 0.0
    %53 = vmatpush1.msra.mxu0 0.0
    %54 = vmatprep.subr.mxu0 0.0
    %55 = vmatpush1.msra.mxu0 0.0
    %56 = vmatprep.subr.mxu0 0.0
    %57 = vmatpush1.msra.mxu0 0.0
    %58 = vmatprep.subr.mxu0 0.0
    %59 = vmatpush1.msra.mxu0 0.0
    %60 = vmatprep.subr.mxu0 0.0
    %61 = vmatpush1.msra.mxu0 0.0
    %62 = vmatprep.subr.mxu0 0.0
    %63 = vmatpush1.msra.mxu0 0.0
    %64 = vmatprep.subr.mxu0 0.0
    %65 = vmatpush1.msra.mxu0 0.0
    %66 = vmatprep.subr.mxu0 0.0
    %67 = vmatpush1.msra.mxu0 0.0
    %68 = vmatprep.subr.mxu0 0.0
    %69 = vmatpush1.msra.mxu0 0.0
    %70 = vmatprep.subr.mxu0 0.0
    %71 = vmatpush1.msra.mxu0 0.0
    %72 = vmatprep.subr.mxu0 0.0
    %73 = vmatpush1.msra.mxu0 0.0
    %74 = vmatprep.subr.mxu0 0.0
    %75 = vmatpush1.msra.mxu0 0.0
    %76 = vmatprep.subr.mxu0 0.0
    %77 = vmatpush1.msra.mxu0 0.0
    %78 = vmatprep.subr.mxu0 0.0
    %79 = vmatpush1.msra.mxu0 %v40
    %80 = vmatprep.subr.mxu0 0.0
    %81 = vmatpush1.msra.mxu0 %v38
    %82 = vmatprep.subr.mxu0 0.0
    %83 = vmatpush2.msra.mxu0 0.0
    %84 = vmatprep.subr.mxu0 0.0
    %85 = vmatpush2.msra.mxu0 0.0
    %86 = vmatprep.subr.mxu0 0.0
    %87 = vmatpush2.msra.mxu0 0.0
    %88 = vmatprep.subr.mxu0 0.0
    %89 = vmatpush2.msra.mxu0 0.0
    %90 = vmatprep.subr.mxu0 0.0
    %91 = vmatpush2.msra.mxu0 0.0
    %92 = vmatprep.subr.mxu0 0.0
    %93 = vmatpush2.msra.mxu0 0.0
    %94 = vmatprep.subr.mxu0 0.0
    %95 = vmatpush2.msra.mxu0 0.0
    %96 = vmatprep.subr.mxu0 0.0
    %97 = vmatpush2.msra.mxu0 0.0
    %98 = vmatprep.subr.mxu0 0.0
    %99 = vmatpush2.msra.mxu0 0.0
    %100 = vmatprep.subr.mxu0 0.0
    %101 = vmatpush2.msra.mxu0 0.0
    %102 = vmatprep.subr.mxu0 0.0
    %103 = vmatpush2.msra.mxu0 0.0
    %104 = vmatprep.subr.mxu0 0.0
    %105 = vmatpush2.msra.mxu0 0.0
    %106 = vmatprep.subr.mxu0 0.0
    %107 = vmatpush2.msra.mxu0 0.0
    %108 = vmatprep.subr.mxu0 0.0
    %109 = vmatpush2.msra.mxu0 0.0
    %110 = vmatprep.subr.mxu0 0.0
    %111 = vmatpush2.msra.mxu0 0.0
    %112 = vmatprep.subr.mxu0 0.0
    %113 = vmatpush2.msra.mxu0 0.0
    %114 = vmatprep.mubr.f32.mxu0 0.0
    %115 = vmatmul.mubr.f32.gmra.mxu0 %v45
    %v116 = vpop.f32.mrf.mxu0
    %v117 = vadd.f32 0.0, %v116
    %v118 = vpop.f32.mrf.mxu0
    %119 = vmatprep.mubr.f32.mxu0 0.0
    %120 = vmatmul.mubr.f32.gmra.mxu0 %v48
    %v121 = vpop.f32.mrf.mxu0
    %v122 = vadd.f32 0.0, %v121
    %v123 = vpop.f32.mrf.mxu0
    %124 = vdwg.mxu0
    %v125 = vld [vmem:[%s2] sm:$0x1]
    %v127 = vcombine.high %v122, %v122
    %v129 = vunpack.c.l.s4 1966171168
    %v130 = vunpack.c.0.s8 %v129
    %v131 = vlaneseq
    %v132 = vshrl.u32 %v131, 7
    %v133 = vsub.s32 %v130, %v132
    %v134 = vrot.slane %v127, %v133
    %v135 = vcombine.high %v134, %v134
    %v137 = vunpack.c.l.s4 1966171168
    %v138 = vunpack.c.0.s8 %v137
    %v139 = vlaneseq
    %v140 = vshrl.u32 %v139, 7
    %v141 = vsub.s32 %v138, %v140
    %v142 = vrot.slane %v135, %v141
    %v143 = vcombine.high %v142, %v142
    %v145 = vmul.f32 %v125, %v143
    %v147 = vlaneseq
    %v148 = vshrl.u32 %v147, 7
    %v149 = vsub.s32 0, %v148
    %v150 = vrot.slane %v145, %v149
    %vm152 = vcmp.le.f32.partialorder %v117, %v150
    %vm153 = vcmp.le.f32.partialorder %v122, %v150
    %v154 = vsel %vm152, 1, 0
    %v155 = vsel %vm153, 1, 0
    %v156 = vsel %vm25, %v154, 0
    %v157 = vsel %vm25, %v155, 0
    %v158 = vadd.s32 %v156, %v157
    %v159 = vrot.slane %v158, 4
    %v160 = vadd.s32 %v158, %v159
    %v161 = vrot.slane %v160, 2
    %v162 = vadd.s32 %v160, %v161
    %v163 = vrot.slane %v162, 1
    %v164 = vadd.s32 %v162, %v163
    %vm165 = vcmp.lt.s32.totalorder %v164, 15
    %v166 = vsel %vm165, %v164, 15
    %vm167 = vcmask 57344
    %168 = vst.msk [vmem:[#allocation3] sm:$0x1] %vm167, %v166
    // Predicated region
    $region18: #{tpu_custom_call.1} parent=1 // pred_check
      _
    $region19: #{tpu_custom_call.1} parent=1 // pred_check_branch
      %170 = sbr.rel (0) target = $region21
    $region20: #{tpu_custom_call.1} parent=1 // pred_region
      %s172 = ssub.s32 16, 16
      %173 = vsyncadd [#allocation4], %s172
      %s175 = sshll.u32 [#allocation3], 4
      %s176 = int_to_ptr.vmem [resolvable:$true] %s175
      %178 = dma.vmem_to_hbm [thread:$0]  %s176, 16, %s4, [#allocation4]
    $region21: #{tpu_custom_call.1} parent=1 // pred_fallthru
      _
    // Predicated region
    $region22: #{tpu_custom_call.1} parent=1 // pred_check
      _
    $region23: #{tpu_custom_call.1} parent=1 // pred_check_branch
      %180 = sbr.rel (0) target = $region25
    $region24: #{tpu_custom_call.1} parent=1 // pred_region
      %181 = dma.done [#allocation4], 16
    $region25: #{tpu_custom_call.1} parent=1 // pred_fallthru
      _
    %182 = vsyncpa [#allocation4], 1

</llo_original>
